<compile_context>
chip_gen: v6e
topology: v6e:2x2x1
jax: 0.10.0
libtpu: 0.0.40
codegen_flags: <defaults>
</compile_context>

<pallas_src>
import jax
import jax.numpy as jnp
from jax.experimental import pallas as pl
from jax.experimental.pallas import tpu as pltpu

K = 3  # conv kernel size (fixed by the module)


def _ph_weight(A, Fm, out_ch, in_ch):
    """weight[i*on+p, j*in+q, k] = sum_s A[s,i,j]*F[s,p,q,k]  -> (out, in, K)."""
    w = jnp.einsum("sij,spqk->ipjqk", A, Fm)
    return w.reshape(out_ch, in_ch, K)


def _ecg_kernel(x_ref, w1_ref, t1_ref, w2_ref, t2_ref, p_ref, o_ref):
    # x_ref : (TB*L, Cin)   bf16, TB batches flattened along rows
    # w1_ref: (K*Cin, C1p)  bf16, BN1 scale folded in
    # t1_ref: (1, C1p)      f32,  conv1 bias + BN1 shift folded
    # w2_ref: (K*C1p, C2p)  bf16, BN2 scale folded in
    # t2_ref: (1, C2p)      f32,  conv2 bias + BN2 shift folded
    # p_ref : (TB, M2)      f32,  per-batch mean-pool matrix (0 on halo rows)
    # o_ref : (TB, C2p)     f32
    ML = x_ref.shape[0]
    M1 = ML - (K - 1)
    M2 = M1 - (K - 1)

    x = x_ref[...]

    # --- Conv1 (valid, stride 1): single im2col matmul, contraction K*Cin ---
    xc = jnp.concatenate([x[k:k + M1, :] for k in range(K)], axis=-1)
    h1 = jnp.dot(xc, w1_ref[...], preferred_element_type=jnp.float32)
    h1 = jnp.maximum(h1 + t1_ref[...], 0.0).astype(w2_ref.dtype)      # (M1, C1p)

    # --- Conv2: single im2col matmul, contraction K*C1p (the FLOP-heavy one) ---
    hc = jnp.concatenate([h1[k:k + M2, :] for k in range(K)], axis=-1)
    h2 = jnp.dot(hc, w2_ref[...], preferred_element_type=jnp.float32)
    h2 = jnp.maximum(h2 + t2_ref[...], 0.0)                           # (M2, C2p)

    # --- AdaptiveAvgPool1d(1): per-batch masked mean as one MXU matmul ---
    o_ref[...] = jnp.dot(p_ref[...], h2, preferred_element_type=jnp.float32)


def ecg_ph_base_forward(x_ncl, params, *, batch_tile=8):
    """x_ncl: (B, Cin, L) float32 (PyTorch NCL).  Returns (B, C2) float32."""
    (w1, b1, g1, be1, rm1, rv1, w2, b2, g2, be2, rm2, rv2) = params
    B, Cin, L = x_ncl.shape
    C1 = w1.shape[0]
    C2 = w2.shape[0]
    eps = 1e-5
    assert L >= 2 * (K - 1) + 1, "sequence too short for two valid K=3 convs"

    # Lane padding to multiples of 128 (lane-dense stores / unpadded MXU tiles).
    pad128 = lambda c: -(-c // 128) * 128
    C1p, C2p = pad128(C1), pad128(C2)

    # Fold conv bias + BatchNorm (inference) into scale & shift; fold the scale
    # into the conv weights so the kernel only applies `+ shift` and ReLU.
    s1 = g1 / jnp.sqrt(rv1 + eps)
    t1 = be1 + s1 * (b1 - rm1)
    s2 = g2 / jnp.sqrt(rv2 + eps)
    t2 = be2 + s2 * (b2 - rm2)

    def stack_w(w, scale, cin_pad, cout_pad):
        # w: (Cout, Cin, K) -> scaled, zero-padded, stacked (K*cin_pad, cout_pad)
        Cout, CinW, _ = w.shape
        wt = jnp.transpose(w * scale[:, None, None], (2, 1, 0))        # (K, Cin, Cout)
        wp = jnp.zeros((K, cin_pad, cout_pad), jnp.float32)
        wp = wp.at[:, :CinW, :Cout].set(wt)
        return wp.reshape(K * cin_pad, cout_pad)

    w1s = stack_w(w1, s1, Cin, C1p).astype(jnp.bfloat16)               # (K*Cin, C1p)
    w2s = stack_w(w2, s2, C1p, C2p).astype(jnp.bfloat16)               # (K*C1p, C2p)
    t1p = jnp.zeros((1, C1p), jnp.float32).at[0, :C1].set(t1)
    t2p = jnp.zeros((1, C2p), jnp.float32).at[0, :C2].set(t2)

    # Batch tiling: pad B to a multiple of TB and flatten (b, l) rows so every
    # grid step runs one big-M matmul covering TB batches.
    TB = batch_tile
    Bp = -(-B // TB) * TB
    x_blc = jnp.transpose(x_ncl, (0, 2, 1)).astype(jnp.bfloat16)       # (B, L, Cin)
    x_blc = jnp.pad(x_blc, ((0, Bp - B), (0, 0), (0, 0)))
    x2 = x_blc.reshape(Bp * L, Cin)                                    # (Bp*L, Cin)

    ML = TB * L
    M2 = ML - 2 * (K - 1)
    L2 = L - 2 * (K - 1)

    # Per-batch mean-pool matrix: selects the L2 valid conv2 rows of each batch
    # (cross-batch halo rows get weight 0) and divides by L2.
    rows = jnp.arange(TB, dtype=jnp.int32)[:, None]
    cols = jnp.arange(M2, dtype=jnp.int32)[None, :]
    pool = jnp.where((cols >= rows * L) & (cols < rows * L + L2),
                     1.0 / L2, 0.0).astype(jnp.float32)                # (TB, M2)

    const = lambda shape: pl.BlockSpec(shape, lambda i: (0,) * len(shape))
    out = pl.pallas_call(
        _ecg_kernel,
        out_shape=jax.ShapeDtypeStruct((Bp, C2p), jnp.float32),
        grid=(Bp // TB,),
        in_specs=[
            pl.BlockSpec((ML, Cin), lambda i: (i, 0)),   # x rows of TB batches
            const((K * Cin, C1p)),                       # stacked conv1 weight
            const((1, C1p)),                             # shift1
            const((K * C1p, C2p)),                       # stacked conv2 weight
            const((1, C2p)),                             # shift2
            const((TB, M2)),                             # pooling matrix
        ],
        out_specs=pl.BlockSpec((TB, C2p), lambda i: (i, 0)),
        compiler_params=pltpu.CompilerParams(
            dimension_semantics=("parallel",)),
    )(x2, w1s, t1p, w2s, t2p, pool)
    return out[:B, :C2]


def init_params(key, n=3, in_ch=3, units=12):
    """Deterministic synthetic params matching ECGPHBase shapes (units % n == 0)."""
    c1, c2 = units, units * 2
    ks = jax.random.split(key, 12)
    A1 = jax.random.normal(ks[0], (n, n, n), jnp.float32) * 0.3
    F1 = jax.random.normal(ks[1], (n, c1 // n, in_ch // n, K), jnp.float32) * 0.3
    b1 = jax.random.normal(ks[2], (c1,), jnp.float32) * 0.1
    w1 = _ph_weight(A1, F1, c1, in_ch)
    g1 = 1.0 + 0.1 * jax.random.normal(ks[3], (c1,), jnp.float32)
    be1 = 0.1 * jax.random.normal(ks[4], (c1,), jnp.float32)
    rm1 = 0.1 * jax.random.normal(ks[5], (c1,), jnp.float32)
    rv1 = 0.9 + 0.2 * jax.random.uniform(ks[6], (c1,), jnp.float32)
    A2 = jax.random.normal(ks[7], (n, n, n), jnp.float32) * 0.3
    F2 = jax.random.normal(ks[8], (n, c2 // n, c1 // n, K), jnp.float32) * 0.3
    b2 = jax.random.normal(ks[9], (c2,), jnp.float32) * 0.1
    w2 = _ph_weight(A2, F2, c2, c1)
    g2 = 1.0 + 0.1 * jax.random.normal(ks[10], (c2,), jnp.float32)
    be2 = 0.1 * jax.random.normal(ks[11], (c2,), jnp.float32)
    rm2 = jnp.zeros((c2,), jnp.float32)
    rv2 = jnp.ones((c2,), jnp.float32)
    return (w1, b1, g1, be1, rm1, rv1, w2, b2, g2, be2, rm2, rv2)


def _reference_forward(x_ncl, params):
    """Pure-JAX f32 reference (im2col conv) for correctness check."""
    (w1, b1, g1, be1, rm1, rv1, w2, b2, g2, be2, rm2, rv2) = params
    eps = 1e-5

    def conv1d(x, w, b):  # x: (B, Cin, L), w: (Cout, Cin, K)
        Lo = x.shape[-1] - K + 1
        patches = jnp.stack([x[:, :, k:k + Lo] for k in range(K)], axis=-1)
        return jnp.einsum("bclk,ock->bol", patches, w) + b[None, :, None]

    def bn_relu(x, g, be, rm, rv):
        y = (x - rm[None, :, None]) / jnp.sqrt(rv[None, :, None] + eps)
        return jnp.maximum(y * g[None, :, None] + be[None, :, None], 0.0)

    h = bn_relu(conv1d(x_ncl, w1, b1), g1, be1, rm1, rv1)
    h = bn_relu(conv1d(h, w2, b2), g2, be2, rm2, rv2)
    return jnp.mean(h, axis=-1)  # (B, C2)


if __name__ == "__main__":
    key = jax.random.PRNGKey(0)
    kx, kp = jax.random.split(key)

    B, Cin, L = 2, 3, 16          # ECG: 3 input leads, length 16 (small demo)
    units = 12                    # stand-in for 513 (must be divisible by n=3)

    x = jax.random.normal(kx, (B, Cin, L), jnp.float32)
    params = init_params(kp, n=3, in_ch=Cin, units=units)

    out = jax.block_until_ready(ecg_ph_base_forward(x, params))
    ref = jax.block_until_ready(_reference_forward(x, params))

    assert out.shape == (B, units * 2), out.shape
    # bf16 matmul inputs with f32 accumulation -> relaxed tolerance vs f32 ref.
    assert jnp.allclose(out, ref, atol=5e-2, rtol=5e-2), float(jnp.max(jnp.abs(out - ref)))
    print("KERNEL_OK")
</pallas_src>

<mosaic_0001>
module attributes {stable_mosaic.version = 11 : i64} {
  func.func @_ecg_kernel(%arg0: i32, %arg1: memref<128x3xbf16, #tpu.memory_space<vmem>>, %arg2: memref<9x128xbf16, #tpu.memory_space<vmem>>, %arg3: memref<1x128xf32, #tpu.memory_space<vmem>>, %arg4: memref<384x128xbf16, #tpu.memory_space<vmem>>, %arg5: memref<1x128xf32, #tpu.memory_space<vmem>>, %arg6: memref<8x124xf32, #tpu.memory_space<vmem>>, %arg7: memref<8x128xf32, #tpu.memory_space<vmem>>) attributes {dimension_semantics = [#tpu.dimension_semantics<parallel>], iteration_bounds = array<i64: 1>, scalar_prefetch = 0 : i64, scratch_operands = 0 : i64, tpu.core_type = #tpu.core_type<tc>, window_params = [{transform_indices = @transform_0, window_bounds = array<i64: 128, 3>}, {pipeline_mode = #tpu.pipeline_mode<synchronous>, transform_indices = @transform_1, window_bounds = array<i64: 9, 128>}, {pipeline_mode = #tpu.pipeline_mode<synchronous>, transform_indices = @transform_2, window_bounds = array<i64: 1, 128>}, {pipeline_mode = #tpu.pipeline_mode<synchronous>, transform_indices = @transform_3, window_bounds = array<i64: 384, 128>}, {pipeline_mode = #tpu.pipeline_mode<synchronous>, transform_indices = @transform_4, window_bounds = array<i64: 1, 128>}, {pipeline_mode = #tpu.pipeline_mode<synchronous>, transform_indices = @transform_5, window_bounds = array<i64: 8, 124>}, {transform_indices = @transform_6, window_bounds = array<i64: 8, 128>}]} {
    %c0 = arith.constant 0 : index
    %c0_0 = arith.constant 0 : index
    %0 = vector.load %arg1[%c0, %c0_0] : memref<128x3xbf16, #tpu.memory_space<vmem>>, vector<128x3xbf16>
    %1 = vector.extract_strided_slice %0 {offsets = [0, 0], sizes = [126, 3], strides = [1, 1]} : vector<128x3xbf16> to vector<126x3xbf16>
    %2 = vector.extract_strided_slice %0 {offsets = [1, 0], sizes = [126, 3], strides = [1, 1]} : vector<128x3xbf16> to vector<126x3xbf16>
    %3 = vector.extract_strided_slice %0 {offsets = [2, 0], sizes = [126, 3], strides = [1, 1]} : vector<128x3xbf16> to vector<126x3xbf16>
    %4 = tpu.concatenate %1, %2, %3 in 1 : vector<126x3xbf16>, vector<126x3xbf16>, vector<126x3xbf16> -> vector<126x9xbf16>
    %c0_1 = arith.constant 0 : index
    %c0_2 = arith.constant 0 : index
    %5 = vector.load %arg2[%c0_1, %c0_2] : memref<9x128xbf16, #tpu.memory_space<vmem>>, vector<9x128xbf16>
    %cst = arith.constant dense<0.000000e+00> : vector<126x128xf32>
    %6 = tpu.matmul %4, %5, %cst {dimension_numbers = #tpu.dot_dimension_numbers<[1], [0], [0], [1], [0, 0, 1, 1], [], []>} : vector<126x9xbf16>, vector<9x128xbf16>, vector<126x128xf32> -> vector<126x128xf32>
    %c0_3 = arith.constant 0 : index
    %c0_4 = arith.constant 0 : index
    %7 = vector.load %arg3[%c0_3, %c0_4] : memref<1x128xf32, #tpu.memory_space<vmem>>, vector<1x128xf32>
    %8 = vector.broadcast %7 : vector<1x128xf32> to vector<126x128xf32>
    %9 = arith.addf %6, %8 : vector<126x128xf32>
    %cst_5 = arith.constant 0.000000e+00 : f32
    %10 = vector.broadcast %cst_5 : f32 to vector<126x128xf32>
    %11 = arith.maximumf %9, %10 : vector<126x128xf32>
    %12 = arith.truncf %11 : vector<126x128xf32> to vector<126x128xbf16>
    %13 = vector.extract_strided_slice %12 {offsets = [0, 0], sizes = [124, 128], strides = [1, 1]} : vector<126x128xbf16> to vector<124x128xbf16>
    %14 = vector.extract_strided_slice %12 {offsets = [1, 0], sizes = [124, 128], strides = [1, 1]} : vector<126x128xbf16> to vector<124x128xbf16>
    %15 = vector.extract_strided_slice %12 {offsets = [2, 0], sizes = [124, 128], strides = [1, 1]} : vector<126x128xbf16> to vector<124x128xbf16>
    %16 = tpu.concatenate %13, %14, %15 in 1 : vector<124x128xbf16>, vector<124x128xbf16>, vector<124x128xbf16> -> vector<124x384xbf16>
    %c0_6 = arith.constant 0 : index
    %c0_7 = arith.constant 0 : index
    %17 = vector.load %arg4[%c0_6, %c0_7] : memref<384x128xbf16, #tpu.memory_space<vmem>>, vector<384x128xbf16>
    %cst_8 = arith.constant dense<0.000000e+00> : vector<124x128xf32>
    %18 = tpu.matmul %16, %17, %cst_8 {dimension_numbers = #tpu.dot_dimension_numbers<[1], [0], [0], [1], [0, 0, 1, 1], [], []>} : vector<124x384xbf16>, vector<384x128xbf16>, vector<124x128xf32> -> vector<124x128xf32>
    %c0_9 = arith.constant 0 : index
    %c0_10 = arith.constant 0 : index
    %19 = vector.load %arg5[%c0_9, %c0_10] : memref<1x128xf32, #tpu.memory_space<vmem>>, vector<1x128xf32>
    %20 = vector.broadcast %19 : vector<1x128xf32> to vector<124x128xf32>
    %21 = arith.addf %18, %20 : vector<124x128xf32>
    %cst_11 = arith.constant 0.000000e+00 : f32
    %22 = vector.broadcast %cst_11 : f32 to vector<124x128xf32>
    %23 = arith.maximumf %21, %22 : vector<124x128xf32>
    %c0_12 = arith.constant 0 : index
    %c0_13 = arith.constant 0 : index
    %24 = vector.load %arg6[%c0_12, %c0_13] : memref<8x124xf32, #tpu.memory_space<vmem>>, vector<8x124xf32>
    %cst_14 = arith.constant dense<0.000000e+00> : vector<8x128xf32>
    %25 = tpu.matmul %24, %23, %cst_14 {dimension_numbers = #tpu.dot_dimension_numbers<[1], [0], [0], [1], [0, 0, 1, 1], [], []>} : vector<8x124xf32>, vector<124x128xf32>, vector<8x128xf32> -> vector<8x128xf32>
    %c0_15 = arith.constant 0 : index
    %c0_16 = arith.constant 0 : index
    %26 = vector.load %arg7[%c0_15, %c0_16] : memref<8x128xf32, #tpu.memory_space<vmem>>, vector<8x128xf32>
    tpu.vector_store %arg7[%c0_15, %c0_16], %25 {strides = array<i32>} : memref<8x128xf32, #tpu.memory_space<vmem>>, vector<8x128xf32>,
    return
  }
  func.func @transform_0(%arg0: i32) -> (i32, i32) {
    %c0_i32 = arith.constant 0 : i32
    %c0_i32_0 = arith.constant 0 : i32
    return %arg0, %c0_i32 : i32, i32
  }
  func.func @transform_1(%arg0: i32) -> (i32, i32) {
    %c0_i32 = arith.constant 0 : i32
    %c0_i32_0 = arith.constant 0 : i32
    %c0_i32_1 = arith.constant 0 : i32
    return %c0_i32, %c0_i32_0 : i32, i32
  }
  func.func @transform_2(%arg0: i32) -> (i32, i32) {
    %c0_i32 = arith.constant 0 : i32
    %c0_i32_0 = arith.constant 0 : i32
    %c0_i32_1 = arith.constant 0 : i32
    return %c0_i32, %c0_i32_0 : i32, i32
  }
  func.func @transform_3(%arg0: i32) -> (i32, i32) {
    %c0_i32 = arith.constant 0 : i32
    %c0_i32_0 = arith.constant 0 : i32
    %c0_i32_1 = arith.constant 0 : i32
    return %c0_i32, %c0_i32_0 : i32, i32
  }
  func.func @transform_4(%arg0: i32) -> (i32, i32) {
    %c0_i32 = arith.constant 0 : i32
    %c0_i32_0 = arith.constant 0 : i32
    %c0_i32_1 = arith.constant 0 : i32
    return %c0_i32, %c0_i32_0 : i32, i32
  }
  func.func @transform_5(%arg0: i32) -> (i32, i32) {
    %c0_i32 = arith.constant 0 : i32
    %c0_i32_0 = arith.constant 0 : i32
    %c0_i32_1 = arith.constant 0 : i32
    return %c0_i32, %c0_i32_0 : i32, i32
  }
  func.func @transform_6(%arg0: i32) -> (i32, i32) {
    %c0_i32 = arith.constant 0 : i32
    %c0_i32_0 = arith.constant 0 : i32
    return %arg0, %c0_i32 : i32, i32
  }
}

</mosaic_0001>

<llo_original>
// kernel: tpu_custom_call.1
$region0: #{tpu_custom_call.1}
  #allocation0 [shape = 'u32[]', space=smem, size = 0x4, offset = 0x4, fixed_abs, tag = 'smem constant byte address 0x4 - core index']
  #allocation1 [shape = 'u32[144,128]{1,0:T(1,128)}', space=vmem, size = 0x12000, scoped, tag = 'internal scratch']
  %s0 = inlined_call_operand.vmem [shape: bf16[128,3], index: 0, kind: input, shape index: {}]
  %s1 = inlined_call_operand.vmem [shape: bf16[9,128], index: 1, kind: input, shape index: {}]
  %s2 = inlined_call_operand.vmem [shape: f32[1,128], index: 2, kind: input, shape index: {}]
  %s3 = inlined_call_operand.hbm [shape: bf16[384,128], index: 3, kind: input, shape index: {}]
  %s4 = inlined_call_operand.vmem [shape: f32[1,128], index: 4, kind: input, shape index: {}]
  %s5 = inlined_call_operand.vmem [shape: f32[8,124], index: 5, kind: input, shape index: {}]
  %s6 = inlined_call_operand.hbm [shape: f32[8,128], index: 6, kind: output, shape index: {}]
  %s7 = sld [smem:[#allocation0]]
  $region38: #{tpu_custom_call.1} parent=0
    _
  %s9 = ssub.s32 1, %s7
  %s10 = scalar_select 0, %s9, %s7
  $region1: #{tpu_custom_call.1} parent=0
    #allocation2 [shape = 'u8[98304]{0}', space=vmem, size = 0x18000, scoped, tag = 'input window, operand 3, single buffered']
    #allocation3 [shape = 's32[1]{0}', space=sflag, size = 0x4, scoped, tag = 'scoped memory for tpu_custom_call.1']
    #allocation4 [shape = 's32[1]{0}', space=sflag, size = 0x4, scoped, tag = 'scoped memory for tpu_custom_call.1']
    #allocation5 [shape = 'u8[4096]{0}', space=vmem, size = 0x1000, scoped, tag = 'output window, operand 0, single buffered']
    %11 = vsyncpa [#allocation3], 0
    %12 = vsyncpa [#allocation4], 0
    // Predicated region
    $region2: #{tpu_custom_call.1} parent=1 // pred_check
      _
    $region3: #{tpu_custom_call.1} parent=1 // pred_check_branch
      %14 = sbr.rel (0) target = $region5
    $region4: #{tpu_custom_call.1} parent=1 // pred_region
      _
    $region5: #{tpu_custom_call.1} parent=1 // pred_fallthru
      _
    // Predicated region
    $region6: #{tpu_custom_call.1} parent=1 // pred_check
      _
    $region7: #{tpu_custom_call.1} parent=1 // pred_check_branch
      %16 = sbr.rel (0) target = $region9
    $region8: #{tpu_custom_call.1} parent=1 // pred_region
      _
    $region9: #{tpu_custom_call.1} parent=1 // pred_fallthru
      _
    // Predicated region
    $region10: #{tpu_custom_call.1} parent=1 // pred_check
      _
    $region11: #{tpu_custom_call.1} parent=1 // pred_check_branch
      %18 = sbr.rel (0) target = $region13
    $region12: #{tpu_custom_call.1} parent=1 // pred_region
      _
    $region13: #{tpu_custom_call.1} parent=1 // pred_fallthru
      _
    // Predicated region
    $region14: #{tpu_custom_call.1} parent=1 // pred_check
      _
    $region15: #{tpu_custom_call.1} parent=1 // pred_check_branch
      %20 = sbr.rel (0) target = $region17
    $region16: #{tpu_custom_call.1} parent=1 // pred_region
      %s22 = ssub.s32 3072, 3072
      %23 = vsyncadd [#allocation3], %s22
      %s24 = sshll.u32 [#allocation2], 4
      %s25 = int_to_ptr.vmem [resolvable:$true] %s24
      %30 = dma.hbm_to_vmem [thread:$0]  %s3, 3072, %s25, [#allocation3], 64, 64, 4
    $region17: #{tpu_custom_call.1} parent=1 // pred_fallthru
      _
    // Predicated region
    $region18: #{tpu_custom_call.1} parent=1 // pred_check
      _
    $region19: #{tpu_custom_call.1} parent=1 // pred_check_branch
      %32 = sbr.rel (0) target = $region21
    $region20: #{tpu_custom_call.1} parent=1 // pred_region
      _
    $region21: #{tpu_custom_call.1} parent=1 // pred_fallthru
      _
    // Predicated region
    $region22: #{tpu_custom_call.1} parent=1 // pred_check
      _
    $region23: #{tpu_custom_call.1} parent=1 // pred_check_branch
      %34 = sbr.rel (0) target = $region25
    $region24: #{tpu_custom_call.1} parent=1 // pred_region
      _
    $region25: #{tpu_custom_call.1} parent=1 // pred_fallthru
      _
    // Predicated region
    $region26: #{tpu_custom_call.1} parent=1 // pred_check
      _
    $region27: #{tpu_custom_call.1} parent=1 // pred_check_branch
      %36 = sbr.rel (0) target = $region29
    $region28: #{tpu_custom_call.1} parent=1 // pred_region
      %37 = dma.done [#allocation3], 3072
    $region29: #{tpu_custom_call.1} parent=1 // pred_fallthru
      _
    %v39 = vld [vmem:[%s0] sm:$0xf]
    %v40 = vld [vmem:[%s0 + $0x4] sm:$0xf]
    %v41 = vld [vmem:[%s0 + $0x8] sm:$0xf]
    %v42 = vld [vmem:[%s0 + $0xc] sm:$0xf]
    %v43 = vld [vmem:[%s0 + $0x10] sm:$0xf]
    %v44 = vld [vmem:[%s0 + $0x14] sm:$0xf]
    %v45 = vld [vmem:[%s0 + $0x18] sm:$0xf]
    %v46 = vld [vmem:[%s0 + $0x1c] sm:$0xf]
    %v47 = vld [vmem:[%s0 + $0x20] sm:$0xf]
    %v48 = vld [vmem:[%s0 + $0x24] sm:$0xf]
    %v49 = vld [vmem:[%s0 + $0x28] sm:$0xf]
    %v50 = vld [vmem:[%s0 + $0x2c] sm:$0xf]
    %v51 = vld [vmem:[%s0 + $0x30] sm:$0xf]
    %v52 = vld [vmem:[%s0 + $0x34] sm:$0xf]
    %v53 = vld [vmem:[%s0 + $0x38] sm:$0xf]
    %v54 = vld [vmem:[%s0 + $0x3c] sm:$0xf]
    %v71 = vunpack.c.l.b16 %v39
    %v72 = vunpack.c.l.b16 %v40
    %v73 = vunpack.c.l.b16 %v41
    %v74 = vunpack.c.l.b16 %v42
    %v75 = vunpack.c.l.b16 %v43
    %v76 = vunpack.c.l.b16 %v44
    %v77 = vunpack.c.l.b16 %v45
    %v78 = vunpack.c.l.b16 %v46
    %v79 = vunpack.c.l.b16 %v47
    %v80 = vunpack.c.l.b16 %v48
    %v81 = vunpack.c.l.b16 %v49
    %v82 = vunpack.c.l.b16 %v50
    %v83 = vunpack.c.l.b16 %v51
    %v84 = vunpack.c.l.b16 %v52
    %v85 = vunpack.c.l.b16 %v53
    %v86 = vunpack.c.l.b16 %v54
    %v87 = vpack.c.b16 %v72, %v71
    %v88 = vpack.c.b16 %v74, %v73
    %v89 = vpack.c.b16 %v76, %v75
    %v90 = vpack.c.b16 %v78, %v77
    %v91 = vpack.c.b16 %v80, %v79
    %v92 = vpack.c.b16 %v82, %v81
    %v93 = vpack.c.b16 %v84, %v83
    %v94 = vpack.c.b16 %v86, %v85
    %vm95 = vsmask.f32 7424
    %v97 = vshrl.u32 %v87, 16
    %v99 = vshll.u32 %v87, 16
    %v101 = vrot.slane %v99, 1
    %v102 = vor.u32 %v97, %v101
    %v104 = vshll.u32 %v88, 16
    %v106 = vrot.slane %v104, 1
    %v107 = vsel %vm95, %v102, %v106
    %v108 = vshrl.u32 %v88, 16
    %v110 = vor.u32 %v108, %v106
    %v112 = vshll.u32 %v89, 16
    %v114 = vrot.slane %v112, 1
    %v115 = vsel %vm95, %v110, %v114
    %v116 = vshrl.u32 %v89, 16
    %v118 = vor.u32 %v116, %v114
    %v120 = vshll.u32 %v90, 16
    %v122 = vrot.slane %v120, 1
    %v123 = vsel %vm95, %v118, %v122
    %v124 = vshrl.u32 %v90, 16
    %v126 = vor.u32 %v124, %v122
    %v128 = vshll.u32 %v91, 16
    %v130 = vrot.slane %v128, 1
    %v131 = vsel %vm95, %v126, %v130
    %v132 = vshrl.u32 %v91, 16
    %v134 = vor.u32 %v132, %v130
    %v136 = vshll.u32 %v92, 16
    %v138 = vrot.slane %v136, 1
    %v139 = vsel %vm95, %v134, %v138
    %v140 = vshrl.u32 %v92, 16
    %v142 = vor.u32 %v140, %v138
    %v144 = vshll.u32 %v93, 16
    %v146 = vrot.slane %v144, 1
    %v147 = vsel %vm95, %v142, %v146
    %v148 = vshrl.u32 %v93, 16
    %v150 = vor.u32 %v148, %v146
    %v152 = vshll.u32 %v94, 16
    %v154 = vrot.slane %v152, 1
    %v155 = vsel %vm95, %v150, %v154
    %v156 = vshrl.u32 %v94, 16
    %v158 = vor.u32 %v156, %v154
    %159 = vrot.lane.b32.xlu0 %v107, 3
    %v160 = vpop.permute.xlu0 %159
    %161 = vrot.lane.b32.xlu0 %v115, 3
    %v162 = vpop.permute.xlu0 %161
    %163 = vrot.lane.b32.xlu0 %v123, 3
    %v164 = vpop.permute.xlu0 %163
    %165 = vrot.lane.b32.xlu0 %v131, 3
    %v166 = vpop.permute.xlu0 %165
    %167 = vrot.lane.b32.xlu0 %v139, 3
    %v168 = vpop.permute.xlu0 %167
    %169 = vrot.lane.b32.xlu0 %v147, 3
    %v170 = vpop.permute.xlu0 %169
    %171 = vrot.lane.b32.xlu0 %v155, 3
    %v172 = vpop.permute.xlu0 %171
    %173 = vrot.lane.b32.xlu0 %v158, 3
    %v174 = vpop.permute.xlu0 %173
    %vm175 = vcmask 1046528
    %v176 = vrot.slane %v87, 1
    %v177 = vrot.slane %v88, 1
    %v178 = vsel %vm175, %v176, %v177
    %v179 = vrot.slane %v89, 1
    %v180 = vsel %vm175, %v177, %v179
    %v181 = vrot.slane %v90, 1
    %v182 = vsel %vm175, %v179, %v181
    %v183 = vrot.slane %v91, 1
    %v184 = vsel %vm175, %v181, %v183
    %v185 = vrot.slane %v92, 1
    %v186 = vsel %vm175, %v183, %v185
    %v187 = vrot.slane %v93, 1
    %v188 = vsel %vm175, %v185, %v187
    %v189 = vrot.slane %v94, 1
    %v190 = vsel %vm175, %v187, %v189
    %191 = vrot.lane.b32.xlu0 %v178, 6
    %v192 = vpop.permute.xlu0 %191
    %193 = vrot.lane.b32.xlu0 %v180, 6
    %v194 = vpop.permute.xlu0 %193
    %195 = vrot.lane.b32.xlu0 %v182, 6
    %v196 = vpop.permute.xlu0 %195
    %197 = vrot.lane.b32.xlu0 %v184, 6
    %v198 = vpop.permute.xlu0 %197
    %199 = vrot.lane.b32.xlu0 %v186, 6
    %v200 = vpop.permute.xlu0 %199
    %201 = vrot.lane.b32.xlu0 %v188, 6
    %v202 = vpop.permute.xlu0 %201
    %203 = vrot.lane.b32.xlu0 %v190, 6
    %v204 = vpop.permute.xlu0 %203
    %205 = vrot.lane.b32.xlu0 %v189, 6
    %v206 = vpop.permute.xlu0 %205
    %vm207 = vcmask 23552
    %v209 = vsel %vm207, %v87, %v160
    %v211 = vsel %vm207, %v88, %v162
    %v213 = vsel %vm207, %v89, %v164
    %v215 = vsel %vm207, %v90, %v166
    %v217 = vsel %vm207, %v91, %v168
    %v219 = vsel %vm207, %v92, %v170
    %v221 = vsel %vm207, %v93, %v172
    %v223 = vsel %vm207, %v94, %v174
    %vm224 = vcmask 48128
    %v226 = vsel %vm224, %v209, %v192
    %v228 = vsel %vm224, %v211, %v194
    %v230 = vsel %vm224, %v213, %v196
    %v232 = vsel %vm224, %v215, %v198
    %v234 = vsel %vm224, %v217, %v200
    %v236 = vsel %vm224, %v219, %v202
    %v238 = vsel %vm224, %v221, %v204
    %v240 = vsel %vm224, %v223, %v206
    %v241 = vld [vmem:[%s1] sm:$0xf]
    %v242 = vld [vmem:[%s1 + $0x4] sm:$0x1]
    %v243 = vld [vmem:[%s2] sm:$0x1]
    %v245 = vlaneseq
    %v246 = vshrl.u32 %v245, 7
    %v247 = vsub.s32 0, %v246
    %v248 = vrot.slane %v243, %v247
    %v252 = vunpack.c.l.b16 %v241
    %v253 = vunpack.c.l.b16 %v242
    %v254 = vpack.c.b16 %v253, %v252
    %vm255 = vcmask 72704
    %v256 = vsel %vm255, %v226, 0
    %v258 = vsel %vm255, %v228, 0
    %v260 = vsel %vm255, %v230, 0
    %v262 = vsel %vm255, %v232, 0
    %v264 = vsel %vm255, %v234, 0
    %v266 = vsel %vm255, %v236, 0
    %v268 = vsel %vm255, %v238, 0
    %v270 = vsel %vm255, %v240, 0
    %vm272 = vcmask 1043456
    %vm273 = vcmask 1044480
    %v274 = vsel %vm272, 4294967295, 65535
    %v275 = vsel %vm273, %v274, 0
    %v277 = vand.u32 %v254, %v275
    %279 = vmatprep.subr.bf16.mxu0 0
    %280 = vmatpush1.bf16.msra.mxu0 0
    %281 = vmatprep.subr.bf16.mxu0 0
    %282 = vmatpush1.bf16.msra.mxu0 0
    %283 = vmatprep.subr.bf16.mxu0 0
    %284 = vmatpush1.bf16.msra.mxu0 0
    %285 = vmatprep.subr.bf16.mxu0 0
    %286 = vmatpush1.bf16.msra.mxu0 0
    %287 = vmatprep.subr.bf16.mxu0 0
    %288 = vmatpush1.bf16.msra.mxu0 0
    %289 = vmatprep.subr.bf16.mxu0 0
    %290 = vmatpush1.bf16.msra.mxu0 0
    %291 = vmatprep.subr.bf16.mxu0 0
    %292 = vmatpush1.bf16.msra.mxu0 0
    %293 = vmatprep.subr.bf16.mxu0 0
    %294 = vmatpush1.bf16.msra.mxu0 %v277
    %295 = vmatprep.subr.bf16.mxu0 0
    %296 = vmatpush2.bf16.msra.mxu0 0
    %297 = vmatprep.subr.bf16.mxu0 0
    %298 = vmatpush2.bf16.msra.mxu0 0
    %299 = vmatprep.subr.bf16.mxu0 0
    %300 = vmatpush2.bf16.msra.mxu0 0
    %301 = vmatprep.subr.bf16.mxu0 0
    %302 = vmatpush2.bf16.msra.mxu0 0
    %303 = vmatprep.subr.bf16.mxu0 0
    %304 = vmatpush2.bf16.msra.mxu0 0
    %305 = vmatprep.subr.bf16.mxu0 0
    %306 = vmatpush2.bf16.msra.mxu0 0
    %307 = vmatprep.subr.bf16.mxu0 0
    %308 = vmatpush2.bf16.msra.mxu0 0
    %309 = vmatprep.subr.bf16.mxu0 0
    %310 = vmatpush2.bf16.msra.mxu0 0
    %311 = vmatprep.mubr.bf16.mxu0 0
    %312 = vmatmul.mubr.bf16.gmra.mxu0 %v256
    %v313 = vpop.f32.mrf.mxu0
    %v314 = vadd.f32 %v248, %v313
    %v315 = vpop.f32.mrf.mxu0
    %v316 = vpop.f32.mrf.mxu0
    %v317 = vadd.f32 %v248, %v316
    %v318 = vpop.f32.mrf.mxu0
    %319 = vmatprep.mubr.bf16.mxu0 0
    %320 = vmatmul.mubr.bf16.gmra.mxu0 %v258
    %v321 = vpop.f32.mrf.mxu0
    %v322 = vadd.f32 %v248, %v321
    %v323 = vpop.f32.mrf.mxu0
    %v324 = vpop.f32.mrf.mxu0
    %v325 = vadd.f32 %v248, %v324
    %v326 = vpop.f32.mrf.mxu0
    %327 = vmatprep.mubr.bf16.mxu0 0
    %328 = vmatmul.mubr.bf16.gmra.mxu0 %v260
    %v329 = vpop.f32.mrf.mxu0
    %v330 = vadd.f32 %v248, %v329
    %v331 = vpop.f32.mrf.mxu0
    %v332 = vpop.f32.mrf.mxu0
    %v333 = vadd.f32 %v248, %v332
    %v334 = vpop.f32.mrf.mxu0
    %335 = vmatprep.mubr.bf16.mxu0 0
    %336 = vmatmul.mubr.bf16.gmra.mxu0 %v262
    %v337 = vpop.f32.mrf.mxu0
    %v338 = vadd.f32 %v248, %v337
    %v339 = vpop.f32.mrf.mxu0
    %v340 = vpop.f32.mrf.mxu0
    %v341 = vadd.f32 %v248, %v340
    %v342 = vpop.f32.mrf.mxu0
    %343 = vmatprep.mubr.bf16.mxu0 0
    %344 = vmatmul.mubr.bf16.gmra.mxu0 %v264
    %v345 = vpop.f32.mrf.mxu0
    %v346 = vadd.f32 %v248, %v345
    %v347 = vpop.f32.mrf.mxu0
    %v348 = vpop.f32.mrf.mxu0
    %v349 = vadd.f32 %v248, %v348
    %v350 = vpop.f32.mrf.mxu0
    %351 = vmatprep.mubr.bf16.mxu0 0
    %352 = vmatmul.mubr.bf16.gmra.mxu0 %v266
    %v353 = vpop.f32.mrf.mxu0
    %v354 = vadd.f32 %v248, %v353
    %v355 = vpop.f32.mrf.mxu0
    %v356 = vpop.f32.mrf.mxu0
    %v357 = vadd.f32 %v248, %v356
    %v358 = vpop.f32.mrf.mxu0
    %359 = vmatprep.mubr.bf16.mxu0 0
    %360 = vmatmul.mubr.bf16.gmra.mxu0 %v268
    %v361 = vpop.f32.mrf.mxu0
    %v362 = vadd.f32 %v248, %v361
    %v363 = vpop.f32.mrf.mxu0
    %v364 = vpop.f32.mrf.mxu0
    %v365 = vadd.f32 %v248, %v364
    %v366 = vpop.f32.mrf.mxu0
    %367 = vmatprep.mubr.bf16.mxu0 0
    %368 = vmatmul.mubr.bf16.gmra.mxu0 %v270
    %v369 = vpop.f32.mrf.mxu0
    %v370 = vadd.f32 %v248, %v369
    %v371 = vpop.f32.mrf.mxu0
    %v372 = vpop.f32.mrf.mxu0
    %v373 = vadd.f32 %v248, %v372
    %v374 = vpop.f32.mrf.mxu0
    %375 = vdwg.mxu0
    %v376 = vmax.f32 %v314, 0.0
    %v377 = vmax.f32 %v317, 0.0
    %v378 = vmax.f32 %v322, 0.0
    %v379 = vmax.f32 %v325, 0.0
    %v380 = vmax.f32 %v330, 0.0
    %v381 = vmax.f32 %v333, 0.0
    %v382 = vmax.f32 %v338, 0.0
    %v383 = vmax.f32 %v341, 0.0
    %v384 = vmax.f32 %v346, 0.0
    %v385 = vmax.f32 %v349, 0.0
    %v386 = vmax.f32 %v354, 0.0
    %v387 = vmax.f32 %v357, 0.0
    %v388 = vmax.f32 %v362, 0.0
    %v389 = vmax.f32 %v365, 0.0
    %v390 = vmax.f32 %v370, 0.0
    %v391 = vmax.f32 %v373, 0.0
    %v392 = vpack.c.bf16 %v377, %v376
    %v393 = vpack.c.bf16 %v379, %v378
    %v394 = vpack.c.bf16 %v381, %v380
    %v395 = vpack.c.bf16 %v383, %v382
    %v396 = vpack.c.bf16 %v385, %v384
    %v397 = vpack.c.bf16 %v387, %v386
    %v398 = vpack.c.bf16 %v389, %v388
    %v399 = vpack.c.bf16 %v391, %v390
    %v401 = vshrl.u32 %v392, 16
    %v403 = vshll.u32 %v392, 16
    %v405 = vrot.slane %v403, 1
    %v406 = vor.u32 %v401, %v405
    %v408 = vshll.u32 %v393, 16
    %v410 = vrot.slane %v408, 1
    %v411 = vsel %vm95, %v406, %v410
    %v412 = vshrl.u32 %v393, 16
    %v414 = vor.u32 %v412, %v410
    %v416 = vshll.u32 %v394, 16
    %v418 = vrot.slane %v416, 1
    %v419 = vsel %vm95, %v414, %v418
    %v420 = vshrl.u32 %v394, 16
    %v422 = vor.u32 %v420, %v418
    %v424 = vshll.u32 %v395, 16
    %v426 = vrot.slane %v424, 1
    %v427 = vsel %vm95, %v422, %v426
    %v428 = vshrl.u32 %v395, 16
    %v430 = vor.u32 %v428, %v426
    %v432 = vshll.u32 %v396, 16
    %v434 = vrot.slane %v432, 1
    %v435 = vsel %vm95, %v430, %v434
    %v436 = vshrl.u32 %v396, 16
    %v438 = vor.u32 %v436, %v434
    %v440 = vshll.u32 %v397, 16
    %v442 = vrot.slane %v440, 1
    %v443 = vsel %vm95, %v438, %v442
    %v444 = vshrl.u32 %v397, 16
    %v446 = vor.u32 %v444, %v442
    %v448 = vshll.u32 %v398, 16
    %v450 = vrot.slane %v448, 1
    %v451 = vsel %vm95, %v446, %v450
    %v452 = vshrl.u32 %v398, 16
    %v454 = vor.u32 %v452, %v450
    %v456 = vshll.u32 %v399, 16
    %v458 = vrot.slane %v456, 1
    %v459 = vsel %vm95, %v454, %v458
    %v460 = vshrl.u32 %v399, 16
    %v462 = vor.u32 %v460, %v458
    %v479 = vrot.slane %v392, 1
    %v480 = vrot.slane %v393, 1
    %v481 = vsel %vm175, %v479, %v480
    %v482 = vrot.slane %v394, 1
    %v483 = vsel %vm175, %v480, %v482
    %v484 = vrot.slane %v395, 1
    %v485 = vsel %vm175, %v482, %v484
    %v486 = vrot.slane %v396, 1
    %v487 = vsel %vm175, %v484, %v486
    %v488 = vrot.slane %v397, 1
    %v489 = vsel %vm175, %v486, %v488
    %v490 = vrot.slane %v398, 1
    %v491 = vsel %vm175, %v488, %v490
    %v492 = vrot.slane %v399, 1
    %v493 = vsel %vm175, %v490, %v492
    %v502 = vld [vmem:[#allocation2] sm:$0xf]
    %v503 = vld [vmem:[#allocation2 + $0x4] sm:$0xf]
    %v504 = vld [vmem:[#allocation2 + $0x8] sm:$0xf]
    %v505 = vld [vmem:[#allocation2 + $0xc] sm:$0xf]
    %v506 = vld [vmem:[#allocation2 + $0x10] sm:$0xf]
    %v507 = vld [vmem:[#allocation2 + $0x14] sm:$0xf]
    %v508 = vld [vmem:[#allocation2 + $0x18] sm:$0xf]
    %v509 = vld [vmem:[#allocation2 + $0x1c] sm:$0xf]
    %v510 = vld [vmem:[#allocation2 + $0x20] sm:$0xf]
    %v511 = vld [vmem:[#allocation2 + $0x24] sm:$0xf]
    %v512 = vld [vmem:[#allocation2 + $0x28] sm:$0xf]
    %v513 = vld [vmem:[#allocation2 + $0x2c] sm:$0xf]
    %v514 = vld [vmem:[#allocation2 + $0x30] sm:$0xf]
    %v515 = vld [vmem:[#allocation2 + $0x34] sm:$0xf]
    %v516 = vld [vmem:[#allocation2 + $0x38] sm:$0xf]
    %v517 = vld [vmem:[#allocation2 + $0x3c] sm:$0xf]
    %v518 = vld [vmem:[#allocation2 + $0x40] sm:$0xf]
    %v519 = vld [vmem:[#allocation2 + $0x44] sm:$0xf]
    %v520 = vld [vmem:[#allocation2 + $0x48] sm:$0xf]
    %v521 = vld [vmem:[#allocation2 + $0x4c] sm:$0xf]
    %v522 = vld [vmem:[#allocation2 + $0x50] sm:$0xf]
    %v523 = vld [vmem:[#allocation2 + $0x54] sm:$0xf]
    %v524 = vld [vmem:[#allocation2 + $0x58] sm:$0xf]
    %v525 = vld [vmem:[#allocation2 + $0x5c] sm:$0xf]
    %v526 = vld [vmem:[#allocation2 + $0x60] sm:$0xf]
    %v527 = vld [vmem:[#allocation2 + $0x64] sm:$0xf]
    %v528 = vld [vmem:[#allocation2 + $0x68] sm:$0xf]
    %v529 = vld [vmem:[#allocation2 + $0x6c] sm:$0xf]
    %v530 = vld [vmem:[#allocation2 + $0x70] sm:$0xf]
    %v531 = vld [vmem:[#allocation2 + $0x74] sm:$0xf]
    %v532 = vld [vmem:[#allocation2 + $0x78] sm:$0xf]
    %v533 = vld [vmem:[#allocation2 + $0x7c] sm:$0xf]
    %v534 = vld [vmem:[#allocation2 + $0x80] sm:$0xf]
    %v535 = vld [vmem:[#allocation2 + $0x84] sm:$0xf]
    %v536 = vld [vmem:[#allocation2 + $0x88] sm:$0xf]
    %v537 = vld [vmem:[#allocation2 + $0x8c] sm:$0xf]
    %v538 = vld [vmem:[#allocation2 + $0x90] sm:$0xf]
    %v539 = vld [vmem:[#allocation2 + $0x94] sm:$0xf]
    %v540 = vld [vmem:[#allocation2 + $0x98] sm:$0xf]
    %v541 = vld [vmem:[#allocation2 + $0x9c] sm:$0xf]
    %v542 = vld [vmem:[#allocation2 + $0xa0] sm:$0xf]
    %v543 = vld [vmem:[#allocation2 + $0xa4] sm:$0xf]
    %v544 = vld [vmem:[#allocation2 + $0xa8] sm:$0xf]
    %v545 = vld [vmem:[#allocation2 + $0xac] sm:$0xf]
    %v546 = vld [vmem:[#allocation2 + $0xb0] sm:$0xf]
    %v547 = vld [vmem:[#allocation2 + $0xb4] sm:$0xf]
    %v548 = vld [vmem:[#allocation2 + $0xb8] sm:$0xf]
    %v549 = vld [vmem:[#allocation2 + $0xbc] sm:$0xf]
    %v550 = vld [vmem:[%s4] sm:$0x1]
    %v552 = vlaneseq
    %v553 = vshrl.u32 %v552, 7
    %v554 = vsub.s32 0, %v553
    %v555 = vrot.slane %v550, %v554
    %v605 = vunpack.c.l.b16 %v502
    %v606 = vunpack.c.l.b16 %v503
    %v607 = vunpack.c.l.b16 %v504
    %v608 = vunpack.c.l.b16 %v505
    %v609 = vunpack.c.l.b16 %v506
    %v610 = vunpack.c.l.b16 %v507
    %v611 = vunpack.c.l.b16 %v508
    %v612 = vunpack.c.l.b16 %v509
    %v613 = vunpack.c.l.b16 %v510
    %v614 = vunpack.c.l.b16 %v511
    %v615 = vunpack.c.l.b16 %v512
    %v616 = vunpack.c.l.b16 %v513
    %v617 = vunpack.c.l.b16 %v514
    %v618 = vunpack.c.l.b16 %v515
    %v619 = vunpack.c.l.b16 %v516
    %v620 = vunpack.c.l.b16 %v517
    %v621 = vunpack.c.l.b16 %v518
    %v622 = vunpack.c.l.b16 %v519
    %v623 = vunpack.c.l.b16 %v520
    %v624 = vunpack.c.l.b16 %v521
    %v625 = vunpack.c.l.b16 %v522
    %v626 = vunpack.c.l.b16 %v523
    %v627 = vunpack.c.l.b16 %v524
    %v628 = vunpack.c.l.b16 %v525
    %v629 = vunpack.c.l.b16 %v526
    %v630 = vunpack.c.l.b16 %v527
    %v631 = vunpack.c.l.b16 %v528
    %v632 = vunpack.c.l.b16 %v529
    %v633 = vunpack.c.l.b16 %v530
    %v634 = vunpack.c.l.b16 %v531
    %v635 = vunpack.c.l.b16 %v532
    %v636 = vunpack.c.l.b16 %v533
    %v637 = vunpack.c.l.b16 %v534
    %v638 = vunpack.c.l.b16 %v535
    %v639 = vunpack.c.l.b16 %v536
    %v640 = vunpack.c.l.b16 %v537
    %v641 = vunpack.c.l.b16 %v538
    %v642 = vunpack.c.l.b16 %v539
    %v643 = vunpack.c.l.b16 %v540
    %v644 = vunpack.c.l.b16 %v541
    %v645 = vunpack.c.l.b16 %v542
    %v646 = vunpack.c.l.b16 %v543
    %v647 = vunpack.c.l.b16 %v544
    %v648 = vunpack.c.l.b16 %v545
    %v649 = vunpack.c.l.b16 %v546
    %v650 = vunpack.c.l.b16 %v547
    %v651 = vunpack.c.l.b16 %v548
    %v652 = vunpack.c.l.b16 %v549
    %v653 = vpack.c.b16 %v606, %v605
    %v654 = vpack.c.b16 %v608, %v607
    %v655 = vpack.c.b16 %v610, %v609
    %v656 = vpack.c.b16 %v612, %v611
    %v657 = vpack.c.b16 %v614, %v613
    %v658 = vpack.c.b16 %v616, %v615
    %v659 = vpack.c.b16 %v618, %v617
    %v660 = vpack.c.b16 %v620, %v619
    %v661 = vpack.c.b16 %v622, %v621
    %v662 = vpack.c.b16 %v624, %v623
    %v663 = vpack.c.b16 %v626, %v625
    %v664 = vpack.c.b16 %v628, %v627
    %v665 = vpack.c.b16 %v630, %v629
    %v666 = vpack.c.b16 %v632, %v631
    %v667 = vpack.c.b16 %v634, %v633
    %v668 = vpack.c.b16 %v636, %v635
    %v669 = vpack.c.b16 %v638, %v637
    %v670 = vpack.c.b16 %v640, %v639
    %v671 = vpack.c.b16 %v642, %v641
    %v672 = vpack.c.b16 %v644, %v643
    %v673 = vpack.c.b16 %v646, %v645
    %v674 = vpack.c.b16 %v648, %v647
    %v675 = vpack.c.b16 %v650, %v649
    %v676 = vpack.c.b16 %v652, %v651
    %701 = vmatprep.subr.bf16.mxu0 0
    %702 = vmatpush1.bf16.msra.mxu0 %v660
    %703 = vmatprep.subr.bf16.mxu0 0
    %704 = vmatpush1.bf16.msra.mxu0 %v659
    %705 = vmatprep.subr.bf16.mxu0 0
    %706 = vmatpush1.bf16.msra.mxu0 %v658
    %707 = vmatprep.subr.bf16.mxu0 0
    %708 = vmatpush1.bf16.msra.mxu0 %v657
    %709 = vmatprep.subr.bf16.mxu0 0
    %710 = vmatpush1.bf16.msra.mxu0 %v656
    %711 = vmatprep.subr.bf16.mxu0 0
    %712 = vmatpush1.bf16.msra.mxu0 %v655
    %713 = vmatprep.subr.bf16.mxu0 0
    %714 = vmatpush1.bf16.msra.mxu0 %v654
    %715 = vmatprep.subr.bf16.mxu0 0
    %716 = vmatpush1.bf16.msra.mxu0 %v653
    %717 = vmatprep.subr.bf16.mxu0 0
    %718 = vmatpush2.bf16.msra.mxu0 %v668
    %719 = vmatprep.subr.bf16.mxu0 0
    %720 = vmatpush2.bf16.msra.mxu0 %v667
    %721 = vmatprep.subr.bf16.mxu0 0
    %722 = vmatpush2.bf16.msra.mxu0 %v666
    %723 = vmatprep.subr.bf16.mxu0 0
    %724 = vmatpush2.bf16.msra.mxu0 %v665
    %725 = vmatprep.subr.bf16.mxu0 0
    %726 = vmatpush2.bf16.msra.mxu0 %v664
    %727 = vmatprep.subr.bf16.mxu0 0
    %728 = vmatpush2.bf16.msra.mxu0 %v663
    %729 = vmatprep.subr.bf16.mxu0 0
    %730 = vmatpush2.bf16.msra.mxu0 %v662
    %731 = vmatprep.subr.bf16.mxu0 0
    %732 = vmatpush2.bf16.msra.mxu0 %v661
    %733 = vmatprep.mubr.bf16.mxu0 %v411
    %734 = vmatmul.mubr.bf16.gmra.mxu0 %v392
    %v735 = vpop.f32.mrf.mxu0
    %v736 = vadd.f32 %v555, %v735
    %v737 = vpop.f32.mrf.mxu0
    %v738 = vpop.f32.mrf.mxu0
    %v739 = vadd.f32 %v555, %v738
    %v740 = vpop.f32.mrf.mxu0
    %741 = vmatprep.mubr.bf16.mxu0 %v419
    %742 = vmatmul.mubr.bf16.gmra.mxu0 %v393
    %v743 = vpop.f32.mrf.mxu0
    %v744 = vadd.f32 %v555, %v743
    %v745 = vpop.f32.mrf.mxu0
    %v746 = vpop.f32.mrf.mxu0
    %v747 = vadd.f32 %v555, %v746
    %v748 = vpop.f32.mrf.mxu0
    %749 = vmatprep.mubr.bf16.mxu0 %v427
    %750 = vmatmul.mubr.bf16.gmra.mxu0 %v394
    %v751 = vpop.f32.mrf.mxu0
    %v752 = vadd.f32 %v555, %v751
    %v753 = vpop.f32.mrf.mxu0
    %v754 = vpop.f32.mrf.mxu0
    %v755 = vadd.f32 %v555, %v754
    %v756 = vpop.f32.mrf.mxu0
    %757 = vmatprep.mubr.bf16.mxu0 %v435
    %758 = vmatmul.mubr.bf16.gmra.mxu0 %v395
    %v759 = vpop.f32.mrf.mxu0
    %v760 = vadd.f32 %v555, %v759
    %v761 = vpop.f32.mrf.mxu0
    %v762 = vpop.f32.mrf.mxu0
    %v763 = vadd.f32 %v555, %v762
    %v764 = vpop.f32.mrf.mxu0
    %765 = vmatprep.mubr.bf16.mxu0 %v443
    %766 = vmatmul.mubr.bf16.gmra.mxu0 %v396
    %v767 = vpop.f32.mrf.mxu0
    %v768 = vadd.f32 %v555, %v767
    %v769 = vpop.f32.mrf.mxu0
    %v770 = vpop.f32.mrf.mxu0
    %v771 = vadd.f32 %v555, %v770
    %v772 = vpop.f32.mrf.mxu0
    %773 = vmatprep.mubr.bf16.mxu0 %v451
    %774 = vmatmul.mubr.bf16.gmra.mxu0 %v397
    %v775 = vpop.f32.mrf.mxu0
    %v776 = vadd.f32 %v555, %v775
    %v777 = vpop.f32.mrf.mxu0
    %v778 = vpop.f32.mrf.mxu0
    %v779 = vadd.f32 %v555, %v778
    %v780 = vpop.f32.mrf.mxu0
    %781 = vmatprep.mubr.bf16.mxu0 %v459
    %782 = vmatmul.mubr.bf16.gmra.mxu0 %v398
    %v783 = vpop.f32.mrf.mxu0
    %v784 = vadd.f32 %v555, %v783
    %v785 = vpop.f32.mrf.mxu0
    %v786 = vpop.f32.mrf.mxu0
    %v787 = vadd.f32 %v555, %v786
    %v788 = vpop.f32.mrf.mxu0
    %789 = vmatprep.mubr.bf16.mxu0 %v462
    %790 = vmatmul.mubr.bf16.gmra.mxu0 %v399
    %v791 = vpop.f32.mrf.mxu0
    %v792 = vadd.f32 %v555, %v791
    %v793 = vpop.f32.mrf.mxu0
    %v794 = vpop.f32.mrf.mxu0
    %v795 = vadd.f32 %v555, %v794
    %v796 = vpop.f32.mrf.mxu0
    %797 = vdwg.mxu0
    %798 = vmatprep.subr.bf16.mxu0 0
    %799 = vmatpush1.bf16.msra.mxu0 %v676
    %800 = vmatprep.subr.bf16.mxu0 0
    %801 = vmatpush1.bf16.msra.mxu0 %v675
    %802 = vmatprep.subr.bf16.mxu0 0
    %803 = vmatpush1.bf16.msra.mxu0 %v674
    %804 = vmatprep.subr.bf16.mxu0 0
    %805 = vmatpush1.bf16.msra.mxu0 %v673
    %806 = vmatprep.subr.bf16.mxu0 0
    %807 = vmatpush1.bf16.msra.mxu0 %v672
    %808 = vmatprep.subr.bf16.mxu0 0
    %809 = vmatpush1.bf16.msra.mxu0 %v671
    %810 = vmatprep.subr.bf16.mxu0 0
    %811 = vmatpush1.bf16.msra.mxu0 %v670
    %812 = vmatprep.subr.bf16.mxu0 0
    %813 = vmatpush1.bf16.msra.mxu0 %v669
    %814 = vmatprep.subr.bf16.mxu0 0
    %815 = vmatpush2.bf16.msra.mxu0 0
    %816 = vmatprep.subr.bf16.mxu0 0
    %817 = vmatpush2.bf16.msra.mxu0 0
    %818 = vmatprep.subr.bf16.mxu0 0
    %819 = vmatpush2.bf16.msra.mxu0 0
    %820 = vmatprep.subr.bf16.mxu0 0
    %821 = vmatpush2.bf16.msra.mxu0 0
    %822 = vmatprep.subr.bf16.mxu0 0
    %823 = vmatpush2.bf16.msra.mxu0 0
    %824 = vmatprep.subr.bf16.mxu0 0
    %825 = vmatpush2.bf16.msra.mxu0 0
    %826 = vmatprep.subr.bf16.mxu0 0
    %827 = vmatpush2.bf16.msra.mxu0 0
    %828 = vmatprep.subr.bf16.mxu0 0
    %829 = vmatpush2.bf16.msra.mxu0 0
    %830 = vmatprep.mubr.bf16.mxu0 0
    %831 = vmatmul.mubr.bf16.gmra.mxu0 %v481
    %v832 = vpop.f32.mrf.mxu0
    %v833 = vadd.f32 %v736, %v832
    %v834 = vpop.f32.mrf.mxu0
    %v835 = vpop.f32.mrf.mxu0
    %v836 = vadd.f32 %v739, %v835
    %v837 = vpop.f32.mrf.mxu0
    %838 = vmatprep.mubr.bf16.mxu0 0
    %839 = vmatmul.mubr.bf16.gmra.mxu0 %v483
    %v840 = vpop.f32.mrf.mxu0
    %v841 = vadd.f32 %v744, %v840
    %v842 = vpop.f32.mrf.mxu0
    %v843 = vpop.f32.mrf.mxu0
    %v844 = vadd.f32 %v747, %v843
    %v845 = vpop.f32.mrf.mxu0
    %846 = vmatprep.mubr.bf16.mxu0 0
    %847 = vmatmul.mubr.bf16.gmra.mxu0 %v485
    %v848 = vpop.f32.mrf.mxu0
    %v849 = vadd.f32 %v752, %v848
    %v850 = vpop.f32.mrf.mxu0
    %v851 = vpop.f32.mrf.mxu0
    %v852 = vadd.f32 %v755, %v851
    %v853 = vpop.f32.mrf.mxu0
    %854 = vmatprep.mubr.bf16.mxu0 0
    %855 = vmatmul.mubr.bf16.gmra.mxu0 %v487
    %v856 = vpop.f32.mrf.mxu0
    %v857 = vadd.f32 %v760, %v856
    %v858 = vpop.f32.mrf.mxu0
    %v859 = vpop.f32.mrf.mxu0
    %v860 = vadd.f32 %v763, %v859
    %v861 = vpop.f32.mrf.mxu0
    %862 = vmatprep.mubr.bf16.mxu0 0
    %863 = vmatmul.mubr.bf16.gmra.mxu0 %v489
    %v864 = vpop.f32.mrf.mxu0
    %v865 = vadd.f32 %v768, %v864
    %v866 = vpop.f32.mrf.mxu0
    %v867 = vpop.f32.mrf.mxu0
    %v868 = vadd.f32 %v771, %v867
    %v869 = vpop.f32.mrf.mxu0
    %870 = vmatprep.mubr.bf16.mxu0 0
    %871 = vmatmul.mubr.bf16.gmra.mxu0 %v491
    %v872 = vpop.f32.mrf.mxu0
    %v873 = vadd.f32 %v776, %v872
    %v874 = vpop.f32.mrf.mxu0
    %v875 = vpop.f32.mrf.mxu0
    %v876 = vadd.f32 %v779, %v875
    %v877 = vpop.f32.mrf.mxu0
    %878 = vmatprep.mubr.bf16.mxu0 0
    %879 = vmatmul.mubr.bf16.gmra.mxu0 %v493
    %v880 = vpop.f32.mrf.mxu0
    %v881 = vadd.f32 %v784, %v880
    %v882 = vpop.f32.mrf.mxu0
    %v883 = vpop.f32.mrf.mxu0
    %v884 = vadd.f32 %v787, %v883
    %v885 = vpop.f32.mrf.mxu0
    %886 = vmatprep.mubr.bf16.mxu0 0
    %887 = vmatmul.mubr.bf16.gmra.mxu0 %v492
    %v888 = vpop.f32.mrf.mxu0
    %v889 = vadd.f32 %v792, %v888
    %v890 = vpop.f32.mrf.mxu0
    %v891 = vpop.f32.mrf.mxu0
    %v892 = vadd.f32 %v795, %v891
    %v893 = vpop.f32.mrf.mxu0
    %894 = vdwg.mxu0
    %v895 = vmax.f32 %v833, 0.0
    %v896 = vmax.f32 %v836, 0.0
    %v897 = vmax.f32 %v841, 0.0
    %v898 = vmax.f32 %v844, 0.0
    %v899 = vmax.f32 %v849, 0.0
    %v900 = vmax.f32 %v852, 0.0
    %v901 = vmax.f32 %v857, 0.0
    %v902 = vmax.f32 %v860, 0.0
    %v903 = vmax.f32 %v865, 0.0
    %v904 = vmax.f32 %v868, 0.0
    %v905 = vmax.f32 %v873, 0.0
    %v906 = vmax.f32 %v876, 0.0
    %v907 = vmax.f32 %v881, 0.0
    %v908 = vmax.f32 %v884, 0.0
    %v909 = vmax.f32 %v889, 0.0
    %v910 = vmax.f32 %v892, 0.0
    %v911 = vld [vmem:[%s5] sm:$0xff]
    %vm912 = vcmask 1014784
    %v914 = vsel %vm912, %v911, 0
    %v917 = vsel %vm272, %v910, 0
    %919 = vmatprep.subr.mxu0 0.0
    %920 = vmatpush1.msra.mxu0 %v917
    %921 = vmatprep.subr.mxu0 0.0
    %922 = vmatpush1.msra.mxu0 %v909
    %923 = vmatprep.subr.mxu0 0.0
    %924 = vmatpush1.msra.mxu0 %v908
    %925 = vmatprep.subr.mxu0 0.0
    %926 = vmatpush1.msra.mxu0 %v907
    %927 = vmatprep.subr.mxu0 0.0
    %928 = vmatpush1.msra.mxu0 %v906
    %929 = vmatprep.subr.mxu0 0.0
    %930 = vmatpush1.msra.mxu0 %v905
    %931 = vmatprep.subr.mxu0 0.0
    %932 = vmatpush1.msra.mxu0 %v904
    %933 = vmatprep.subr.mxu0 0.0
    %934 = vmatpush1.msra.mxu0 %v903
    %935 = vmatprep.subr.mxu0 0.0
    %936 = vmatpush1.msra.mxu0 %v902
    %937 = vmatprep.subr.mxu0 0.0
    %938 = vmatpush1.msra.mxu0 %v901
    %939 = vmatprep.subr.mxu0 0.0
    %940 = vmatpush1.msra.mxu0 %v900
    %941 = vmatprep.subr.mxu0 0.0
    %942 = vmatpush1.msra.mxu0 %v899
    %943 = vmatprep.subr.mxu0 0.0
    %944 = vmatpush1.msra.mxu0 %v898
    %945 = vmatprep.subr.mxu0 0.0
    %946 = vmatpush1.msra.mxu0 %v897
    %947 = vmatprep.subr.mxu0 0.0
    %948 = vmatpush1.msra.mxu0 %v896
    %949 = vmatprep.subr.mxu0 0.0
    %950 = vmatpush1.msra.mxu0 %v895
    %951 = vmatprep.subr.mxu0 0.0
    %952 = vmatpush2.msra.mxu0 0.0
    %953 = vmatprep.subr.mxu0 0.0
    %954 = vmatpush2.msra.mxu0 0.0
    %955 = vmatprep.subr.mxu0 0.0
    %956 = vmatpush2.msra.mxu0 0.0
    %957 = vmatprep.subr.mxu0 0.0
    %958 = vmatpush2.msra.mxu0 0.0
    %959 = vmatprep.subr.mxu0 0.0
    %960 = vmatpush2.msra.mxu0 0.0
    %961 = vmatprep.subr.mxu0 0.0
    %962 = vmatpush2.msra.mxu0 0.0
    %963 = vmatprep.subr.mxu0 0.0
    %964 = vmatpush2.msra.mxu0 0.0
    %965 = vmatprep.subr.mxu0 0.0
    %966 = vmatpush2.msra.mxu0 0.0
    %967 = vmatprep.subr.mxu0 0.0
    %968 = vmatpush2.msra.mxu0 0.0
    %969 = vmatprep.subr.mxu0 0.0
    %970 = vmatpush2.msra.mxu0 0.0
    %971 = vmatprep.subr.mxu0 0.0
    %972 = vmatpush2.msra.mxu0 0.0
    %973 = vmatprep.subr.mxu0 0.0
    %974 = vmatpush2.msra.mxu0 0.0
    %975 = vmatprep.subr.mxu0 0.0
    %976 = vmatpush2.msra.mxu0 0.0
    %977 = vmatprep.subr.mxu0 0.0
    %978 = vmatpush2.msra.mxu0 0.0
    %979 = vmatprep.subr.mxu0 0.0
    %980 = vmatpush2.msra.mxu0 0.0
    %981 = vmatprep.subr.mxu0 0.0
    %982 = vmatpush2.msra.mxu0 0.0
    %983 = vmatprep.mubr.f32.mxu0 0.0
    %984 = vmatmul.mubr.f32.gmra.mxu0 %v914
    %v985 = vpop.f32.mrf.mxu0
    %v986 = vadd.f32 0.0, %v985
    %v987 = vpop.f32.mrf.mxu0
    %988 = vdwg.mxu0
    %989 = vst [vmem:[#allocation5] sm:$0xff] %v986
    // Predicated region
    $region30: #{tpu_custom_call.1} parent=1 // pred_check
      _
    $region31: #{tpu_custom_call.1} parent=1 // pred_check_branch
      %991 = sbr.rel (0) target = $region33
    $region32: #{tpu_custom_call.1} parent=1 // pred_region
      %s993 = ssub.s32 128, 128
      %994 = vsyncadd [#allocation4], %s993
      %s996 = sshll.u32 [#allocation5], 4
      %s997 = int_to_ptr.vmem [resolvable:$true] %s996
      %999 = dma.vmem_to_hbm [thread:$0]  %s997, 128, %s6, [#allocation4]
    $region33: #{tpu_custom_call.1} parent=1 // pred_fallthru
      _
    // Predicated region
    $region34: #{tpu_custom_call.1} parent=1 // pred_check
      _
    $region35: #{tpu_custom_call.1} parent=1 // pred_check_branch
      %1001 = sbr.rel (0) target = $region37
    $region36: #{tpu_custom_call.1} parent=1 // pred_region
      %1002 = dma.done [#allocation4], 128
    $region37: #{tpu_custom_call.1} parent=1 // pred_fallthru
      _
    %1003 = vsyncpa [#allocation3], 1
    %1004 = vsyncpa [#allocation4], 1

</llo_original>
